<compile_context>
chip_gen: v5e
topology: v5e:2x2
jax: 0.10.0
libtpu: 0.0.40
codegen_flags: <defaults>
</compile_context>

<pallas_src>
import jax
import jax.numpy as jnp
from jax.experimental import pallas as pl
from jax.experimental.pallas import tpu as pltpu

EPS = 1e-12  # F.normalize default
_LANE = 128
_BUDGET_BYTES = 16 * 1024 * 1024     # ~2x(in+out) double-buffered, f32-equivalent
_STEP_TARGET_BYTES = 2 * 1024 * 1024  # per-step HBM traffic target (amortize overhead)
_VMEM_LIMIT = 32 * 1024 * 1024        # raise v5e's 16 MiB default; matches v6e/v7x


def _l2_normalize_kernel(x_ref, o_ref):
    # x_ref: (bN, C, T) block — full channel extent, lane tile of spatial, batch slab.
    x = x_ref[...]
    # Accumulate sum of squares in f32 (skip the upcast copy for f32 inputs).
    xf = x if x.dtype == jnp.float32 else x.astype(jnp.float32)
    sq_sum = jnp.sum(xf * xf, axis=1, keepdims=True)           # (bN, 1, T) f32
    # rsqrt of the eps^2-clamped sum-of-squares == 1 / max(||x||, eps)
    # (sqrt is monotone, eps^2 = 1e-24 is representable in f32).
    inv = jax.lax.rsqrt(jnp.maximum(sq_sum, EPS * EPS))        # (bN, 1, T) f32
    # Final scale in the input dtype (packed bf16 VPU on v6e/v7x; exact for f32).
    o_ref[...] = (x * inv.astype(x.dtype)).astype(o_ref.dtype)


def _choose_blocks(n, c, hw, itemsize):
    """Pick (bN, T) from a VMEM budget; no divisibility requirement (cdiv grid)."""
    eff = max(itemsize, 4)  # account for in-kernel f32 temporaries when itemsize < 4
    hw_pad = ((hw + _LANE - 1) // _LANE) * _LANE  # lane-aligned extent of one row

    # Lane tile: largest candidate (capped at one full row) that fits the budget.
    t = _LANE
    for cand in (2048, 1024, 512, 256, 128):
        cand = min(cand, hw_pad)
        if 4 * c * cand * eff <= _BUDGET_BYTES:
            t = cand
            break
    # else: very wide C — fall back to 128 lanes and rely on vmem_limit_bytes headroom.

    # Batch block: grow bN while the block fits the budget and each step still
    # moves less than the per-step traffic target. Normalization is independent
    # per (n, pixel), so blocking N is trivially correct.
    bn = 1
    while (bn < n
           and 4 * (bn * 2) * c * t * eff <= _BUDGET_BYTES
           and bn * c * t * itemsize < _STEP_TARGET_BYTES):
        bn *= 2
    bn = min(bn, n)
    return bn, t


def l2_normalize_embedding(x):
    """x: (N, C, H, W) float array. Returns x L2-normalized along dim=1."""
    n, c, h, w = x.shape
    hw = h * w
    x2 = x.reshape(n, c, hw)

    bn, t = _choose_blocks(n, c, hw, jnp.dtype(x.dtype).itemsize)
    grid = (pl.cdiv(n, bn), pl.cdiv(hw, t))

    out = pl.pallas_call(
        _l2_normalize_kernel,
        out_shape=jax.ShapeDtypeStruct((n, c, hw), x.dtype),
        grid_spec=pltpu.PrefetchScalarGridSpec(
            num_scalar_prefetch=0,
            grid=grid,
            in_specs=[pl.BlockSpec((bn, c, t), lambda i, j: (i, 0, j))],
            out_specs=pl.BlockSpec((bn, c, t), lambda i, j: (i, 0, j)),
        ),
        compiler_params=pltpu.CompilerParams(
            dimension_semantics=("parallel", "parallel"),
            vmem_limit_bytes=_VMEM_LIMIT,
        ),
    )(x2)

    return out.reshape(n, c, h, w)


if __name__ == "__main__":
    key = jax.random.PRNGKey(0)
    # small shapes consistent with a 4D NCHW embedding map
    x = jax.random.normal(key, (2, 4, 16, 16), dtype=jnp.float32)

    y = l2_normalize_embedding(x)
    y = jax.block_until_ready(y)

    # reference check in plain JAX (same semantics as F.normalize)
    norm = jnp.sqrt(jnp.sum(x * x, axis=1, keepdims=True))
    y_ref = x / jnp.maximum(norm, EPS)
    assert jnp.allclose(y, y_ref, atol=1e-6, rtol=1e-6), "mismatch vs reference"

    print("KERNEL_OK")
</pallas_src>

<mosaic_0001>
module attributes {stable_mosaic.version = 11 : i64} {
  func.func @_l2_normalize_kernel(%arg0: i32, %arg1: i32, %arg2: memref<2x4x256xf32, #tpu.memory_space<vmem>>, %arg3: memref<2x4x256xf32, #tpu.memory_space<vmem>>) attributes {dimension_semantics = [#tpu.dimension_semantics<parallel>, #tpu.dimension_semantics<parallel>], iteration_bounds = array<i64: 1, 1>, scalar_prefetch = 0 : i64, scratch_operands = 0 : i64, tpu.core_type = #tpu.core_type<tc>, window_params = [{transform_indices = @transform_0, window_bounds = array<i64: 2, 4, 256>}, {transform_indices = @transform_1, window_bounds = array<i64: 2, 4, 256>}]} {
    %c0 = arith.constant 0 : index
    %c0_0 = arith.constant 0 : index
    %c0_1 = arith.constant 0 : index
    %0 = vector.load %arg2[%c0, %c0_0, %c0_1] : memref<2x4x256xf32, #tpu.memory_space<vmem>>, vector<2x4x256xf32>
    %1 = arith.mulf %0, %0 : vector<2x4x256xf32>
    %cst = arith.constant dense<0.000000e+00> : vector<2x256xf32>
    %2 = vector.multi_reduction <add>, %1, %cst [1] : vector<2x4x256xf32> to vector<2x256xf32>
    %3 = vector.shape_cast %2 : vector<2x256xf32> to vector<2x1x256xf32>
    %cst_2 = arith.constant 1.000000e-24 : f32
    %4 = vector.broadcast %cst_2 : f32 to vector<2x1x256xf32>
    %5 = arith.maximumf %3, %4 : vector<2x1x256xf32>
    %6 = math.rsqrt %5 : vector<2x1x256xf32>
    %7 = vector.broadcast %6 : vector<2x1x256xf32> to vector<2x4x256xf32>
    %8 = arith.mulf %0, %7 : vector<2x4x256xf32>
    %c0_3 = arith.constant 0 : index
    %c0_4 = arith.constant 0 : index
    %c0_5 = arith.constant 0 : index
    %9 = vector.load %arg3[%c0_3, %c0_4, %c0_5] : memref<2x4x256xf32, #tpu.memory_space<vmem>>, vector<2x4x256xf32>
    tpu.vector_store %arg3[%c0_3, %c0_4, %c0_5], %8 {strides = array<i32>} : memref<2x4x256xf32, #tpu.memory_space<vmem>>, vector<2x4x256xf32>,
    return
  }
  func.func @transform_0(%arg0: i32, %arg1: i32) -> (i32, i32, i32) {
    %c0_i32 = arith.constant 0 : i32
    %c0_i32_0 = arith.constant 0 : i32
    return %arg0, %c0_i32, %arg1 : i32, i32, i32
  }
  func.func @transform_1(%arg0: i32, %arg1: i32) -> (i32, i32, i32) {
    %c0_i32 = arith.constant 0 : i32
    %c0_i32_0 = arith.constant 0 : i32
    return %arg0, %c0_i32, %arg1 : i32, i32, i32
  }
}

</mosaic_0001>

<llo_original>
// kernel: tpu_custom_call.1
$region0: #{tpu_custom_call.1}
  #allocation0 [shape = 'u32[]', space=smem, size = 0x4, offset = 0x4, fixed_abs, tag = 'smem constant byte address 0x4 - core index']
  #allocation1 [shape = 'u32[72,128]{1,0:T(1,128)}', space=vmem, size = 0x9000, scoped, tag = 'internal scratch']
  %s0 = inlined_call_operand.hbm [shape: f32[2,4,256], index: 0, kind: input, shape index: {}]
  %s1 = inlined_call_operand.hbm [shape: f32[2,4,256], index: 1, kind: output, shape index: {}]
  %s2 = sld [smem:[#allocation0]]
  $region18: #{tpu_custom_call.1} parent=0
    _
  %s4 = ssub.s32 1, %s2
  %s5 = scalar_select 0, %s4, %s2
  $region1: #{tpu_custom_call.1} parent=0
    #allocation2 [shape = 'u8[8192]{0}', space=vmem, size = 0x2000, scoped, tag = 'input window, operand 0, single buffered']
    #allocation3 [shape = 's32[1]{0}', space=sflag, size = 0x4, scoped, tag = 'scoped memory for tpu_custom_call.1']
    #allocation4 [shape = 's32[1]{0}', space=sflag, size = 0x4, scoped, tag = 'scoped memory for tpu_custom_call.1']
    #allocation5 [shape = 'u8[8192]{0}', space=vmem, size = 0x2000, scoped, tag = 'output window, operand 0, single buffered']
    %6 = vsyncpa [#allocation3], 0
    %7 = vsyncpa [#allocation4], 0
    // Predicated region
    $region2: #{tpu_custom_call.1} parent=1 // pred_check
      _
    $region3: #{tpu_custom_call.1} parent=1 // pred_check_branch
      %9 = sbr.rel (0) target = $region5
    $region4: #{tpu_custom_call.1} parent=1 // pred_region
      %11 = vsyncadd [#allocation3], 0
      %s12 = sshll.u32 %s0, 4
      %s13 = int_to_ptr.hbm [resolvable:$true] %s12
      %s14 = sshll.u32 [#allocation2], 4
      %s15 = int_to_ptr.vmem [resolvable:$true] %s14
      %20 = dma.hbm_to_vmem [thread:$0]  %s13, 256, %s15, [#allocation3], 128, 128, 8
    $region5: #{tpu_custom_call.1} parent=1 // pred_fallthru
      _
    // Predicated region
    $region6: #{tpu_custom_call.1} parent=1 // pred_check
      _
    $region7: #{tpu_custom_call.1} parent=1 // pred_check_branch
      %22 = sbr.rel (0) target = $region9
    $region8: #{tpu_custom_call.1} parent=1 // pred_region
      %24 = dma.done [#allocation3], 256
    $region9: #{tpu_custom_call.1} parent=1 // pred_fallthru
      _
    %v25 = vld [vmem:[#allocation2] sm:$0xff]
    %v26 = vld [vmem:[#allocation2 + $0x8] sm:$0xff]
    %v27 = vmul.f32 %v25, %v25
    %v28 = vmul.f32 %v26, %v26
    %31 = vst [vmem:[#allocation1] ss:$2 sm:$0xff] %v27
    %v32 = vld.sshfl [vmem:[#allocation1] sm:$0xff pattern:$0x75316420]
    %v33 = vld.sshfl [vmem:[#allocation1 + $0x8] sm:$0xff pattern:$0x75316420]
    %s34 = scalar_lea.vmem [#allocation1], 16
    %35 = vst [vmem:[%s34] ss:$2 sm:$0xff] %v28
    %v36 = vld.sshfl [vmem:[#allocation1 + $0x10] sm:$0xff pattern:$0x75316420]
    %v37 = vld.sshfl [vmem:[#allocation1 + $0x18] sm:$0xff pattern:$0x75316420]
    %vm42 = vcmask 1043456
    %v43 = vsel %vm42, %v32, 0.0
    %v44 = vrot.slane %v43, 4
    %v45 = vadd.f32 %v43, %v44
    %v46 = vrot.slane %v45, 2
    %v47 = vadd.f32 %v45, %v46
    %v48 = vrot.slane %v47, 1
    %v49 = vadd.f32 %v47, %v48
    %v50 = vsel %vm42, %v33, 0.0
    %v51 = vrot.slane %v50, 4
    %v52 = vadd.f32 %v50, %v51
    %v53 = vrot.slane %v52, 2
    %v54 = vadd.f32 %v52, %v53
    %v55 = vrot.slane %v54, 1
    %v56 = vadd.f32 %v54, %v55
    %v57 = vsel %vm42, %v36, 0.0
    %v58 = vrot.slane %v57, 4
    %v59 = vadd.f32 %v57, %v58
    %v60 = vrot.slane %v59, 2
    %v61 = vadd.f32 %v59, %v60
    %v62 = vrot.slane %v61, 1
    %v63 = vadd.f32 %v61, %v62
    %v64 = vsel %vm42, %v37, 0.0
    %v65 = vrot.slane %v64, 4
    %v66 = vadd.f32 %v64, %v65
    %v67 = vrot.slane %v66, 2
    %v68 = vadd.f32 %v66, %v67
    %v69 = vrot.slane %v68, 1
    %v70 = vadd.f32 %v68, %v69
    %v71 = vmax.f32 %v49, 1e-24
    %v72 = vmax.f32 %v56, 1e-24
    %v73 = vmax.f32 %v63, 1e-24
    %v74 = vmax.f32 %v70, 1e-24
    %v75 = vrsqrt.pop %v71
    %v76 = vmul.f32 %v75, %v71
    %v77 = vmul.f32 %v76, %v75
    %v78 = vmul.f32 0.5, %v77
    %v79 = vsub.f32 1.5, %v78
    %v80 = vmul.f32 %v75, %v79
    %vm81 = vweird.f32 %v71
    %vm82 = vweird.f32 %v75
    %vm83 = vmor %vm81, %vm82
    %v84 = vsel %vm83, %v75, %v80
    %v85 = vrsqrt.pop %v72
    %v86 = vmul.f32 %v85, %v72
    %v87 = vmul.f32 %v86, %v85
    %v88 = vmul.f32 0.5, %v87
    %v89 = vsub.f32 1.5, %v88
    %v90 = vmul.f32 %v85, %v89
    %vm91 = vweird.f32 %v72
    %vm92 = vweird.f32 %v85
    %vm93 = vmor %vm91, %vm92
    %v94 = vsel %vm93, %v85, %v90
    %v95 = vrsqrt.pop %v73
    %v96 = vmul.f32 %v95, %v73
    %v97 = vmul.f32 %v96, %v95
    %v98 = vmul.f32 0.5, %v97
    %v99 = vsub.f32 1.5, %v98
    %v100 = vmul.f32 %v95, %v99
    %vm101 = vweird.f32 %v73
    %vm102 = vweird.f32 %v95
    %vm103 = vmor %vm101, %vm102
    %v104 = vsel %vm103, %v95, %v100
    %v105 = vrsqrt.pop %v74
    %v106 = vmul.f32 %v105, %v74
    %v107 = vmul.f32 %v106, %v105
    %v108 = vmul.f32 0.5, %v107
    %v109 = vsub.f32 1.5, %v108
    %v110 = vmul.f32 %v105, %v109
    %vm111 = vweird.f32 %v74
    %vm112 = vweird.f32 %v105
    %vm113 = vmor %vm111, %vm112
    %v114 = vsel %vm113, %v105, %v110
    %v119 = vrot.slane %v94, 4
    %v120 = vrot.slane %v114, 4
    %v121 = vsel %vm42, %v84, %v119
    %v122 = vsel %vm42, %v104, %v120
    %v125 = vmul.f32 %v25, %v121
    %v126 = vmul.f32 %v26, %v122
    %127 = vst [vmem:[#allocation5] sm:$0xff] %v125
    %128 = vst [vmem:[#allocation5 + $0x8] sm:$0xff] %v126
    // Predicated region
    $region10: #{tpu_custom_call.1} parent=1 // pred_check
      _
    $region11: #{tpu_custom_call.1} parent=1 // pred_check_branch
      %130 = sbr.rel (0) target = $region13
    $region12: #{tpu_custom_call.1} parent=1 // pred_region
      %132 = vsyncadd [#allocation4], 0
      %s133 = sshll.u32 [#allocation5], 4
      %s134 = int_to_ptr.vmem [resolvable:$true] %s133
      %s135 = sshll.u32 %s1, 4
      %s136 = int_to_ptr.hbm [resolvable:$true] %s135
      %141 = dma.vmem_to_hbm [thread:$0]  %s134, 256, %s136, [#allocation4], 128, 128, 8
    $region13: #{tpu_custom_call.1} parent=1 // pred_fallthru
      _
    // Predicated region
    $region14: #{tpu_custom_call.1} parent=1 // pred_check
      _
    $region15: #{tpu_custom_call.1} parent=1 // pred_check_branch
      %143 = sbr.rel (0) target = $region17
    $region16: #{tpu_custom_call.1} parent=1 // pred_region
      %145 = dma.done [#allocation4], 256
    $region17: #{tpu_custom_call.1} parent=1 // pred_fallthru
      _
    %146 = vsyncpa [#allocation3], 1
    %147 = vsyncpa [#allocation4], 1

</llo_original>
